<compile_context>
chip_gen: v7x
topology: tpu7x:2x2x1
jax: 0.10.0
libtpu: 0.0.40
codegen_flags: <defaults>
</compile_context>

<pallas_src>
import functools

import numpy as np
import jax
import jax.numpy as jnp
from jax.experimental import pallas as pl
from jax.experimental.pallas import tpu as pltpu


def _dwconv_kernel(x_ref, mult_ref, pw_ref, o_ref, *, W, dilation):
    # x_ref   : (R, HW)          R = G*C_in stacked (batch, channel) rows
    # mult_ref: (9, R, HW)       per-tap multiplier = dw weight * padding mask
    # pw_ref  : (Ro, R)          Ro = G*C_out, batch-block-diagonal 1x1 weight
    # o_ref   : (Ro, HW)
    HW = x_ref.shape[-1]
    d = dilation
    xf = x_ref[...].astype(jnp.float32)                      # (R, HW)

    # ---- depthwise 3x3: 8 rolls (XLU) + 9 FMAs (VPU), masks pre-folded ----
    acc = xf * mult_ref[4]                                   # centre tap, no shift
    for ki in range(3):
        for kj in range(3):
            if ki == 1 and kj == 1:
                continue
            delta = (ki - 1) * d * W + (kj - 1) * d          # flat-index offset
            rolled = pltpu.roll(xf, shift=(-delta) % HW, axis=1)
            acc = acc + rolled * mult_ref[ki * 3 + kj]

    # ---- pointwise 1x1: one MXU dot (block-diagonal across stacked batches) --
    out = jnp.dot(pw_ref[...].astype(jnp.float32), acc,
                  preferred_element_type=jnp.float32)        # (Ro, HW)
    o_ref[...] = out.astype(o_ref.dtype)


def dwconv(x_nchw, dw_weight, pw_weight, dilation=1):
    """x_nchw: (B, C_in, H, W); dw_weight: (C_in, 1, 3, 3); pw_weight: (C_out, C_in, 1, 1)."""
    B, C_in, H, W = x_nchw.shape
    C_out = pw_weight.shape[0]
    HW = H * W
    assert dilation < H and dilation < W, "roll+mask padding assumes dilation < H, W"

    # Stack G batches per block so G*C_in fills the 8 f32 sublanes; remaining
    # batch groups become a parallel grid axis (keeps both v7x TCs busy at B>=4).
    G = 1
    for g in range(1, B + 1):
        if B % g == 0 and g * C_in <= 8:
            G = g
    R, Ro, n_groups = G * C_in, G * C_out, B // G

    # (B, C_in, H, W) -> (B*C_in, H*W): free contiguous merge, no HBM pass.
    x_flat = x_nchw.reshape(B * C_in, HW)

    # Trace-time zero-padding masks, one per tap (pure numpy constants).
    pos = np.arange(HW)
    row, col = pos // W, pos % W
    masks = np.empty((9, HW), np.float32)
    for ki in range(3):
        for kj in range(3):
            oi, oj = (ki - 1) * dilation, (kj - 1) * dilation
            valid = np.ones(HW, bool)
            if oi < 0:
                valid &= row >= -oi
            elif oi > 0:
                valid &= row < H - oi
            if oj < 0:
                valid &= col >= -oj
            elif oj > 0:
                valid &= col < W - oj
            masks[ki * 3 + kj] = valid.astype(np.float32)

    # Fold masks into the depthwise weights: mult[tap, row, p] (row = b*C_in + ci).
    dw_taps = dw_weight[:, 0].reshape(C_in, 9).T.astype(jnp.float32)   # (9, C_in)
    dw_taps = jnp.tile(dw_taps, (1, G))                                # (9, R)
    mult = dw_taps[:, :, None] * jnp.asarray(masks)[:, None, :]        # (9, R, HW)

    # Batch-block-diagonal 1x1 weight: kron(I_G, pw) -> (G*C_out, G*C_in).
    pw_2d = pw_weight[:, :, 0, 0].astype(jnp.float32)                  # (C_out, C_in)
    pw_bd = jnp.kron(jnp.eye(G, dtype=jnp.float32), pw_2d)             # (Ro, R)

    kernel = functools.partial(_dwconv_kernel, W=W, dilation=dilation)

    out_flat = pl.pallas_call(
        kernel,
        out_shape=jax.ShapeDtypeStruct((B * C_out, HW), x_nchw.dtype),
        grid_spec=pltpu.PrefetchScalarGridSpec(
            num_scalar_prefetch=0,
            grid=(n_groups,),
            in_specs=[
                pl.BlockSpec((R, HW), lambda g: (g, 0)),
                pl.BlockSpec((9, R, HW), lambda g: (0, 0, 0)),
                pl.BlockSpec((Ro, R), lambda g: (0, 0)),
            ],
            out_specs=pl.BlockSpec((Ro, HW), lambda g: (g, 0)),
        ),
        compiler_params=pltpu.CompilerParams(
            dimension_semantics=("parallel",),
        ),
    )(x_flat, mult, pw_bd)

    return out_flat.reshape(B, C_out, H, W)


if __name__ == "__main__":
    key = jax.random.PRNGKey(0)
    k_x, k_dw, k_pw = jax.random.split(key, 3)

    B, C_in, C_out, H, W = 2, 4, 8, 16, 16

    x = jax.random.normal(k_x, (B, C_in, H, W), dtype=jnp.float32)
    # Deterministic synthetic weights (PyTorch parameter shapes):
    dw_weight = jax.random.normal(k_dw, (C_in, 1, 3, 3), dtype=jnp.float32) * 0.1
    pw_weight = jax.random.normal(k_pw, (C_out, C_in, 1, 1), dtype=jnp.float32) * 0.1

    def ref(x, dw_w, pw_w, dilation):
        y = jax.lax.conv_general_dilated(
            x, dw_w, window_strides=(1, 1),
            padding=((dilation, dilation), (dilation, dilation)),
            rhs_dilation=(dilation, dilation),
            feature_group_count=x.shape[1],
            dimension_numbers=("NCHW", "OIHW", "NCHW"))
        return jax.lax.conv_general_dilated(
            y, pw_w, window_strides=(1, 1), padding="VALID",
            dimension_numbers=("NCHW", "OIHW", "NCHW"))

    for dilation in (1, 2):
        out = dwconv(x, dw_weight, pw_weight, dilation=dilation)
        jax.block_until_ready(out)
        expected = ref(x, dw_weight, pw_weight, dilation)
        assert out.shape == (B, C_out, H, W)
        assert jnp.allclose(out, expected, atol=1e-4, rtol=1e-4)

    print("KERNEL_OK")
</pallas_src>

<mosaic_0001>
module attributes {stable_mosaic.version = 11 : i64} {
  func.func @_dwconv_kernel(%arg0: i32, %arg1: memref<8x256xf32, #tpu.memory_space<vmem>>, %arg2: memref<9x8x256xf32, #tpu.memory_space<vmem>>, %arg3: memref<16x8xf32, #tpu.memory_space<vmem>>, %arg4: memref<16x256xf32, #tpu.memory_space<vmem>>) attributes {dimension_semantics = [#tpu.dimension_semantics<parallel>], iteration_bounds = array<i64: 1>, scalar_prefetch = 0 : i64, scratch_operands = 0 : i64, tpu.core_type = #tpu.core_type<tc>, window_params = [{transform_indices = @transform_0, window_bounds = array<i64: 8, 256>}, {pipeline_mode = #tpu.pipeline_mode<synchronous>, transform_indices = @transform_1, window_bounds = array<i64: 9, 8, 256>}, {pipeline_mode = #tpu.pipeline_mode<synchronous>, transform_indices = @transform_2, window_bounds = array<i64: 16, 8>}, {transform_indices = @transform_3, window_bounds = array<i64: 16, 256>}]} {
    %c0 = arith.constant 0 : index
    %c0_0 = arith.constant 0 : index
    %0 = vector.load %arg1[%c0, %c0_0] : memref<8x256xf32, #tpu.memory_space<vmem>>, vector<8x256xf32>
    %c4 = arith.constant 4 : index
    %c0_1 = arith.constant 0 : index
    %c0_2 = arith.constant 0 : index
    %1 = vector.load %arg2[%c4, %c0_1, %c0_2] : memref<9x8x256xf32, #tpu.memory_space<vmem>>, vector<1x8x256xf32>
    %2 = vector.shape_cast %1 : vector<1x8x256xf32> to vector<8x256xf32>
    %3 = arith.mulf %0, %2 : vector<8x256xf32>
    %c17_i32 = arith.constant 17 : i32
    %4 = tpu.dynamic_rotate %0 by %c17_i32 dim 1 : vector<8x256xf32>, i32 -> vector<8x256xf32>
    %c0_3 = arith.constant 0 : index
    %c0_4 = arith.constant 0 : index
    %c0_5 = arith.constant 0 : index
    %5 = vector.load %arg2[%c0_3, %c0_4, %c0_5] : memref<9x8x256xf32, #tpu.memory_space<vmem>>, vector<1x8x256xf32>
    %6 = vector.shape_cast %5 : vector<1x8x256xf32> to vector<8x256xf32>
    %7 = arith.mulf %4, %6 : vector<8x256xf32>
    %8 = arith.addf %3, %7 : vector<8x256xf32>
    %c16_i32 = arith.constant 16 : i32
    %9 = tpu.dynamic_rotate %0 by %c16_i32 dim 1 : vector<8x256xf32>, i32 -> vector<8x256xf32>
    %c1 = arith.constant 1 : index
    %c0_6 = arith.constant 0 : index
    %c0_7 = arith.constant 0 : index
    %10 = vector.load %arg2[%c1, %c0_6, %c0_7] : memref<9x8x256xf32, #tpu.memory_space<vmem>>, vector<1x8x256xf32>
    %11 = vector.shape_cast %10 : vector<1x8x256xf32> to vector<8x256xf32>
    %12 = arith.mulf %9, %11 : vector<8x256xf32>
    %13 = arith.addf %8, %12 : vector<8x256xf32>
    %c15_i32 = arith.constant 15 : i32
    %14 = tpu.dynamic_rotate %0 by %c15_i32 dim 1 : vector<8x256xf32>, i32 -> vector<8x256xf32>
    %c2 = arith.constant 2 : index
    %c0_8 = arith.constant 0 : index
    %c0_9 = arith.constant 0 : index
    %15 = vector.load %arg2[%c2, %c0_8, %c0_9] : memref<9x8x256xf32, #tpu.memory_space<vmem>>, vector<1x8x256xf32>
    %16 = vector.shape_cast %15 : vector<1x8x256xf32> to vector<8x256xf32>
    %17 = arith.mulf %14, %16 : vector<8x256xf32>
    %18 = arith.addf %13, %17 : vector<8x256xf32>
    %c1_i32 = arith.constant 1 : i32
    %19 = tpu.dynamic_rotate %0 by %c1_i32 dim 1 : vector<8x256xf32>, i32 -> vector<8x256xf32>
    %c3 = arith.constant 3 : index
    %c0_10 = arith.constant 0 : index
    %c0_11 = arith.constant 0 : index
    %20 = vector.load %arg2[%c3, %c0_10, %c0_11] : memref<9x8x256xf32, #tpu.memory_space<vmem>>, vector<1x8x256xf32>
    %21 = vector.shape_cast %20 : vector<1x8x256xf32> to vector<8x256xf32>
    %22 = arith.mulf %19, %21 : vector<8x256xf32>
    %23 = arith.addf %18, %22 : vector<8x256xf32>
    %c255_i32 = arith.constant 255 : i32
    %24 = tpu.dynamic_rotate %0 by %c255_i32 dim 1 : vector<8x256xf32>, i32 -> vector<8x256xf32>
    %c5 = arith.constant 5 : index
    %c0_12 = arith.constant 0 : index
    %c0_13 = arith.constant 0 : index
    %25 = vector.load %arg2[%c5, %c0_12, %c0_13] : memref<9x8x256xf32, #tpu.memory_space<vmem>>, vector<1x8x256xf32>
    %26 = vector.shape_cast %25 : vector<1x8x256xf32> to vector<8x256xf32>
    %27 = arith.mulf %24, %26 : vector<8x256xf32>
    %28 = arith.addf %23, %27 : vector<8x256xf32>
    %c241_i32 = arith.constant 241 : i32
    %29 = tpu.dynamic_rotate %0 by %c241_i32 dim 1 : vector<8x256xf32>, i32 -> vector<8x256xf32>
    %c6 = arith.constant 6 : index
    %c0_14 = arith.constant 0 : index
    %c0_15 = arith.constant 0 : index
    %30 = vector.load %arg2[%c6, %c0_14, %c0_15] : memref<9x8x256xf32, #tpu.memory_space<vmem>>, vector<1x8x256xf32>
    %31 = vector.shape_cast %30 : vector<1x8x256xf32> to vector<8x256xf32>
    %32 = arith.mulf %29, %31 : vector<8x256xf32>
    %33 = arith.addf %28, %32 : vector<8x256xf32>
    %c240_i32 = arith.constant 240 : i32
    %34 = tpu.dynamic_rotate %0 by %c240_i32 dim 1 : vector<8x256xf32>, i32 -> vector<8x256xf32>
    %c7 = arith.constant 7 : index
    %c0_16 = arith.constant 0 : index
    %c0_17 = arith.constant 0 : index
    %35 = vector.load %arg2[%c7, %c0_16, %c0_17] : memref<9x8x256xf32, #tpu.memory_space<vmem>>, vector<1x8x256xf32>
    %36 = vector.shape_cast %35 : vector<1x8x256xf32> to vector<8x256xf32>
    %37 = arith.mulf %34, %36 : vector<8x256xf32>
    %38 = arith.addf %33, %37 : vector<8x256xf32>
    %c239_i32 = arith.constant 239 : i32
    %39 = tpu.dynamic_rotate %0 by %c239_i32 dim 1 : vector<8x256xf32>, i32 -> vector<8x256xf32>
    %c8 = arith.constant 8 : index
    %c0_18 = arith.constant 0 : index
    %c0_19 = arith.constant 0 : index
    %40 = vector.load %arg2[%c8, %c0_18, %c0_19] : memref<9x8x256xf32, #tpu.memory_space<vmem>>, vector<1x8x256xf32>
    %41 = vector.shape_cast %40 : vector<1x8x256xf32> to vector<8x256xf32>
    %42 = arith.mulf %39, %41 : vector<8x256xf32>
    %43 = arith.addf %38, %42 : vector<8x256xf32>
    %c0_20 = arith.constant 0 : index
    %c0_21 = arith.constant 0 : index
    %44 = vector.load %arg3[%c0_20, %c0_21] : memref<16x8xf32, #tpu.memory_space<vmem>>, vector<16x8xf32>
    %cst = arith.constant dense<0.000000e+00> : vector<16x256xf32>
    %45 = tpu.matmul %44, %43, %cst {dimension_numbers = #tpu.dot_dimension_numbers<[1], [0], [0], [1], [0, 0, 1, 1], [], []>} : vector<16x8xf32>, vector<8x256xf32>, vector<16x256xf32> -> vector<16x256xf32>
    %c0_22 = arith.constant 0 : index
    %c0_23 = arith.constant 0 : index
    %46 = vector.load %arg4[%c0_22, %c0_23] : memref<16x256xf32, #tpu.memory_space<vmem>>, vector<16x256xf32>
    tpu.vector_store %arg4[%c0_22, %c0_23], %45 {strides = array<i32>} : memref<16x256xf32, #tpu.memory_space<vmem>>, vector<16x256xf32>,
    return
  }
  func.func @transform_0(%arg0: i32) -> (i32, i32) {
    %c0_i32 = arith.constant 0 : i32
    %c0_i32_0 = arith.constant 0 : i32
    return %arg0, %c0_i32 : i32, i32
  }
  func.func @transform_1(%arg0: i32) -> (i32, i32, i32) {
    %c0_i32 = arith.constant 0 : i32
    %c0_i32_0 = arith.constant 0 : i32
    %c0_i32_1 = arith.constant 0 : i32
    %c0_i32_2 = arith.constant 0 : i32
    return %c0_i32, %c0_i32_0, %c0_i32_1 : i32, i32, i32
  }
  func.func @transform_2(%arg0: i32) -> (i32, i32) {
    %c0_i32 = arith.constant 0 : i32
    %c0_i32_0 = arith.constant 0 : i32
    %c0_i32_1 = arith.constant 0 : i32
    return %c0_i32, %c0_i32_0 : i32, i32
  }
  func.func @transform_3(%arg0: i32) -> (i32, i32) {
    %c0_i32 = arith.constant 0 : i32
    %c0_i32_0 = arith.constant 0 : i32
    return %arg0, %c0_i32 : i32, i32
  }
}

</mosaic_0001>

<llo_original>
// kernel: tpu_custom_call.1
$region0: #{tpu_custom_call.1}
  #allocation0 [shape = 'u32[]', space=smem, size = 0x4, offset = 0x4, fixed_abs, tag = 'smem constant byte address 0x4 - core index']
  #allocation1 [shape = 'u32[144,128]{1,0:T(1,128)}', space=vmem, size = 0x12000, scoped, tag = 'internal scratch']
  %s0 = inlined_call_operand.vmem [shape: f32[8,256], index: 0, kind: input, shape index: {}]
  %s1 = inlined_call_operand.hbm [shape: f32[9,8,256], index: 1, kind: input, shape index: {}]
  %s2 = inlined_call_operand.vmem [shape: f32[16,8], index: 2, kind: input, shape index: {}]
  %s3 = inlined_call_operand.hbm [shape: f32[16,256], index: 3, kind: output, shape index: {}]
  %s4 = sld [smem:[#allocation0]]
  $region26: #{tpu_custom_call.1} parent=0
    _
  %s6 = ssub.s32 1, %s4
  %s7 = scalar_select 0, %s6, %s4
  $region1: #{tpu_custom_call.1} parent=0
    #allocation2 [shape = 'u8[73728]{0}', space=vmem, size = 0x12000, scoped, tag = 'input window, operand 1, single buffered']
    #allocation3 [shape = 's32[1]{0}', space=sflag, size = 0x4, scoped, tag = 'scoped memory for tpu_custom_call.1']
    #allocation4 [shape = 's32[1]{0}', space=sflag, size = 0x4, scoped, tag = 'scoped memory for tpu_custom_call.1']
    #allocation5 [shape = 'u8[16384]{0}', space=vmem, size = 0x4000, scoped, tag = 'output window, operand 0, single buffered']
    %8 = vsyncpa [#allocation3], 0
    %9 = vsyncpa [#allocation4], 0
    // Predicated region
    $region2: #{tpu_custom_call.1} parent=1 // pred_check
      _
    $region3: #{tpu_custom_call.1} parent=1 // pred_check_branch
      %11 = sbr.rel (0) target = $region5
    $region4: #{tpu_custom_call.1} parent=1 // pred_region
      _
    $region5: #{tpu_custom_call.1} parent=1 // pred_fallthru
      _
    // Predicated region
    $region6: #{tpu_custom_call.1} parent=1 // pred_check
      _
    $region7: #{tpu_custom_call.1} parent=1 // pred_check_branch
      %13 = sbr.rel (0) target = $region9
    $region8: #{tpu_custom_call.1} parent=1 // pred_region
      %s15 = ssub.s32 2304, 2304
      %16 = vsyncadd [#allocation3], %s15
      %s17 = sshll.u32 [#allocation2], 4
      %s18 = int_to_ptr.vmem [resolvable:$true] %s17
      %23 = dma.hbm_to_vmem [thread:$0]  %s1, 2304, %s18, [#allocation3], 256, 256, 16
    $region9: #{tpu_custom_call.1} parent=1 // pred_fallthru
      _
    // Predicated region
    $region10: #{tpu_custom_call.1} parent=1 // pred_check
      _
    $region11: #{tpu_custom_call.1} parent=1 // pred_check_branch
      %25 = sbr.rel (0) target = $region13
    $region12: #{tpu_custom_call.1} parent=1 // pred_region
      _
    $region13: #{tpu_custom_call.1} parent=1 // pred_fallthru
      _
    // Predicated region
    $region14: #{tpu_custom_call.1} parent=1 // pred_check
      _
    $region15: #{tpu_custom_call.1} parent=1 // pred_check_branch
      %27 = sbr.rel (0) target = $region17
    $region16: #{tpu_custom_call.1} parent=1 // pred_region
      %28 = dma.done [#allocation3], 2304
    $region17: #{tpu_custom_call.1} parent=1 // pred_fallthru
      _
    %v29 = vld [vmem:[%s0] sm:$0xff]
    %v30 = vld [vmem:[%s0 + $0x8] sm:$0xff]
    %s31 = scalar_lea.vmem [#allocation2], 64
    %v32 = vld [vmem:[%s31] sm:$0xff]
    %v33 = vld [vmem:[%s31 + $0x8] sm:$0xff]
    %v34 = vmul.f32 %v29, %v32
    %v35 = vmul.f32 %v30, %v33
    %36 = vrot.lane.b32.xlu0 %v29, 17
    %v37 = vpop.permute.xlu0 %36
    %38 = vrot.lane.b32.xlu0 %v30, 17
    %v39 = vpop.permute.xlu0 %38
    %v40 = vlaneseq
    %v41 = vand.u32 %v40, 127
    %vm42 = vcmp.lt.s32.totalorder %v41, 17
    %v43 = vsel %vm42, %v37, %v39
    %v44 = vsel %vm42, %v39, %v37
    %v45 = vld [vmem:[#allocation2] sm:$0xff]
    %v46 = vld [vmem:[#allocation2 + $0x8] sm:$0xff]
    %v47 = vmul.f32 %v44, %v45
    %v48 = vmul.f32 %v43, %v46
    %v49 = vadd.f32 %v34, %v47
    %v50 = vadd.f32 %v35, %v48
    %51 = vrot.lane.b32.xlu0 %v29, 16
    %v52 = vpop.permute.xlu0 %51
    %53 = vrot.lane.b32.xlu0 %v30, 16
    %v54 = vpop.permute.xlu0 %53
    %vm55 = vcmp.lt.s32.totalorder %v41, 16
    %v56 = vsel %vm55, %v52, %v54
    %v57 = vsel %vm55, %v54, %v52
    %s58 = scalar_lea.vmem [#allocation2], 16
    %v59 = vld [vmem:[%s58] sm:$0xff]
    %v60 = vld [vmem:[%s58 + $0x8] sm:$0xff]
    %v61 = vmul.f32 %v57, %v59
    %v62 = vmul.f32 %v56, %v60
    %v63 = vadd.f32 %v49, %v61
    %v64 = vadd.f32 %v50, %v62
    %65 = vrot.lane.b32.xlu0 %v29, 15
    %v66 = vpop.permute.xlu0 %65
    %67 = vrot.lane.b32.xlu0 %v30, 15
    %v68 = vpop.permute.xlu0 %67
    %vm69 = vcmp.lt.s32.totalorder %v41, 15
    %v70 = vsel %vm69, %v66, %v68
    %v71 = vsel %vm69, %v68, %v66
    %s72 = scalar_lea.vmem [#allocation2], 32
    %v73 = vld [vmem:[%s72] sm:$0xff]
    %v74 = vld [vmem:[%s72 + $0x8] sm:$0xff]
    %v75 = vmul.f32 %v71, %v73
    %v76 = vmul.f32 %v70, %v74
    %v77 = vadd.f32 %v63, %v75
    %v78 = vadd.f32 %v64, %v76
    %79 = vrot.lane.b32.xlu0 %v29, 1
    %v80 = vpop.permute.xlu0 %79
    %81 = vrot.lane.b32.xlu0 %v30, 1
    %v82 = vpop.permute.xlu0 %81
    %vm83 = vcmp.lt.s32.totalorder %v41, 1
    %v84 = vsel %vm83, %v80, %v82
    %v85 = vsel %vm83, %v82, %v80
    %s86 = scalar_lea.vmem [#allocation2], 48
    %v87 = vld [vmem:[%s86] sm:$0xff]
    %v88 = vld [vmem:[%s86 + $0x8] sm:$0xff]
    %v89 = vmul.f32 %v85, %v87
    %v90 = vmul.f32 %v84, %v88
    %v91 = vadd.f32 %v77, %v89
    %v92 = vadd.f32 %v78, %v90
    %93 = vrot.lane.b32.xlu0 %v29, 127
    %v94 = vpop.permute.xlu0 %93
    %95 = vrot.lane.b32.xlu0 %v30, 127
    %v96 = vpop.permute.xlu0 %95
    %vm97 = vcmp.lt.s32.totalorder %v41, 127
    %v98 = vsel %vm97, %v94, %v96
    %v99 = vsel %vm97, %v96, %v94
    %s100 = scalar_lea.vmem [#allocation2], 80
    %v101 = vld [vmem:[%s100] sm:$0xff]
    %v102 = vld [vmem:[%s100 + $0x8] sm:$0xff]
    %v103 = vmul.f32 %v98, %v101
    %v104 = vmul.f32 %v99, %v102
    %v105 = vadd.f32 %v91, %v103
    %v106 = vadd.f32 %v92, %v104
    %107 = vrot.lane.b32.xlu0 %v29, 113
    %v108 = vpop.permute.xlu0 %107
    %109 = vrot.lane.b32.xlu0 %v30, 113
    %v110 = vpop.permute.xlu0 %109
    %vm111 = vcmp.lt.s32.totalorder %v41, 113
    %v112 = vsel %vm111, %v108, %v110
    %v113 = vsel %vm111, %v110, %v108
    %s114 = scalar_lea.vmem [#allocation2], 96
    %v115 = vld [vmem:[%s114] sm:$0xff]
    %v116 = vld [vmem:[%s114 + $0x8] sm:$0xff]
    %v117 = vmul.f32 %v112, %v115
    %v118 = vmul.f32 %v113, %v116
    %v119 = vadd.f32 %v105, %v117
    %v120 = vadd.f32 %v106, %v118
    %121 = vrot.lane.b32.xlu0 %v29, 112
    %v122 = vpop.permute.xlu0 %121
    %123 = vrot.lane.b32.xlu0 %v30, 112
    %v124 = vpop.permute.xlu0 %123
    %vm125 = vcmp.lt.s32.totalorder %v41, 112
    %v126 = vsel %vm125, %v122, %v124
    %v127 = vsel %vm125, %v124, %v122
    %s128 = scalar_lea.vmem [#allocation2], 112
    %v129 = vld [vmem:[%s128] sm:$0xff]
    %v130 = vld [vmem:[%s128 + $0x8] sm:$0xff]
    %v131 = vmul.f32 %v126, %v129
    %v132 = vmul.f32 %v127, %v130
    %v133 = vadd.f32 %v119, %v131
    %v134 = vadd.f32 %v120, %v132
    %135 = vrot.lane.b32.xlu0 %v29, 111
    %v136 = vpop.permute.xlu0 %135
    %137 = vrot.lane.b32.xlu0 %v30, 111
    %v138 = vpop.permute.xlu0 %137
    %vm139 = vcmp.lt.s32.totalorder %v41, 111
    %v140 = vsel %vm139, %v136, %v138
    %v141 = vsel %vm139, %v138, %v136
    %s142 = scalar_lea.vmem [#allocation2], 128
    %v143 = vld [vmem:[%s142] sm:$0xff]
    %v144 = vld [vmem:[%s142 + $0x8] sm:$0xff]
    %v145 = vmul.f32 %v140, %v143
    %v146 = vmul.f32 %v141, %v144
    %v147 = vadd.f32 %v133, %v145
    %v148 = vadd.f32 %v134, %v146
    %v149 = vld [vmem:[%s2] sm:$0xff]
    %v150 = vld [vmem:[%s2 + $0x8] sm:$0xff]
    %vm151 = vcmask 64512
    %v153 = vsel %vm151, %v149, 0
    %v156 = vsel %vm151, %v150, 0
    %158 = vmatprep.subr.mxu0 %v148
    %159 = vmatpush1.msra.mxu0 %v147
    %160 = vmatprep.subr.mxu0 0.0
    %161 = vmatpush1.msra.mxu0 0.0
    %162 = vmatprep.subr.mxu0 0.0
    %163 = vmatpush1.msra.mxu0 0.0
    %164 = vmatprep.subr.mxu0 0.0
    %165 = vmatpush1.msra.mxu0 0.0
    %166 = vmatprep.subr.mxu0 0.0
    %167 = vmatpush1.msra.mxu0 0.0
    %168 = vmatprep.subr.mxu0 0.0
    %169 = vmatpush1.msra.mxu0 0.0
    %170 = vmatprep.subr.mxu0 0.0
    %171 = vmatpush1.msra.mxu0 0.0
    %172 = vmatprep.subr.mxu0 0.0
    %173 = vmatpush1.msra.mxu0 0.0
    %174 = vmatprep.subr.mxu0 0.0
    %175 = vmatpush1.msra.mxu0 0.0
    %176 = vmatprep.subr.mxu0 0.0
    %177 = vmatpush1.msra.mxu0 0.0
    %178 = vmatprep.subr.mxu0 0.0
    %179 = vmatpush1.msra.mxu0 0.0
    %180 = vmatprep.subr.mxu0 0.0
    %181 = vmatpush1.msra.mxu0 0.0
    %182 = vmatprep.subr.mxu0 0.0
    %183 = vmatpush1.msra.mxu0 0.0
    %184 = vmatprep.subr.mxu0 0.0
    %185 = vmatpush1.msra.mxu0 0.0
    %186 = vmatprep.subr.mxu0 0.0
    %187 = vmatpush1.msra.mxu0 0.0
    %188 = vmatprep.subr.mxu0 0.0
    %189 = vmatpush1.msra.mxu0 0.0
    %190 = vmatprep.subr.mxu0 0.0
    %191 = vmatpush1.msra.mxu0 0.0
    %192 = vmatprep.subr.mxu0 0.0
    %193 = vmatpush1.msra.mxu0 0.0
    %194 = vmatprep.subr.mxu0 0.0
    %195 = vmatpush1.msra.mxu0 0.0
    %196 = vmatprep.subr.mxu0 0.0
    %197 = vmatpush1.msra.mxu0 0.0
    %198 = vmatprep.subr.mxu0 0.0
    %199 = vmatpush1.msra.mxu0 0.0
    %200 = vmatprep.subr.mxu0 0.0
    %201 = vmatpush1.msra.mxu0 0.0
    %202 = vmatprep.subr.mxu0 0.0
    %203 = vmatpush1.msra.mxu0 0.0
    %204 = vmatprep.subr.mxu0 0.0
    %205 = vmatpush1.msra.mxu0 0.0
    %206 = vmatprep.subr.mxu0 0.0
    %207 = vmatpush1.msra.mxu0 0.0
    %208 = vmatprep.subr.mxu0 0.0
    %209 = vmatpush1.msra.mxu0 0.0
    %210 = vmatprep.subr.mxu0 0.0
    %211 = vmatpush1.msra.mxu0 0.0
    %212 = vmatprep.subr.mxu0 0.0
    %213 = vmatpush1.msra.mxu0 0.0
    %214 = vmatprep.subr.mxu0 0.0
    %215 = vmatpush1.msra.mxu0 0.0
    %216 = vmatprep.subr.mxu0 0.0
    %217 = vmatpush1.msra.mxu0 0.0
    %218 = vmatprep.subr.mxu0 0.0
    %219 = vmatpush1.msra.mxu0 0.0
    %220 = vmatprep.subr.mxu0 0.0
    %221 = vmatpush1.msra.mxu0 0.0
    %222 = vmatprep.mubr.f32.mxu0 0.0
    %223 = vmatmul.mubr.f32.gmra.mrb[0].mxu0 %v153
    %v224 = vpop.f32.mrb[0].mxu0
    %v225 = vadd.f32 0.0, %v224
    %v226 = vpop.f32.mrb[0].mxu0
    %v227 = vadd.f32 0.0, %v226
    %228 = vmatprep.mubr.f32.mxu0 0.0
    %229 = vmatmul.mubr.f32.gmra.mrb[0].mxu0 %v156
    %v230 = vpop.f32.mrb[0].mxu0
    %v231 = vadd.f32 0.0, %v230
    %v232 = vpop.f32.mrb[0].mxu0
    %v233 = vadd.f32 0.0, %v232
    %234 = vdwg.mxu0
    %235 = vst [vmem:[#allocation5] sm:$0xff] %v225
    %236 = vst [vmem:[#allocation5 + $0x8] sm:$0xff] %v227
    %237 = vst [vmem:[#allocation5 + $0x10] sm:$0xff] %v231
    %238 = vst [vmem:[#allocation5 + $0x18] sm:$0xff] %v233
    // Predicated region
    $region18: #{tpu_custom_call.1} parent=1 // pred_check
      _
    $region19: #{tpu_custom_call.1} parent=1 // pred_check_branch
      %240 = sbr.rel (0) target = $region21
    $region20: #{tpu_custom_call.1} parent=1 // pred_region
      %s242 = ssub.s32 512, 512
      %243 = vsyncadd [#allocation4], %s242
      %s244 = sshll.u32 [#allocation5], 4
      %s245 = int_to_ptr.vmem [resolvable:$true] %s244
      %250 = dma.vmem_to_hbm [thread:$0]  %s245, 512, %s3, [#allocation4], 256, 256, 16
    $region21: #{tpu_custom_call.1} parent=1 // pred_fallthru
      _
    // Predicated region
    $region22: #{tpu_custom_call.1} parent=1 // pred_check
      _
    $region23: #{tpu_custom_call.1} parent=1 // pred_check_branch
      %252 = sbr.rel (0) target = $region25
    $region24: #{tpu_custom_call.1} parent=1 // pred_region
      %253 = dma.done [#allocation4], 512
    $region25: #{tpu_custom_call.1} parent=1 // pred_fallthru
      _
    %254 = vsyncpa [#allocation3], 1
    %255 = vsyncpa [#allocation4], 1

</llo_original>
